<compile_context>
chip_gen: v5e
topology: v5e:2x2
jax: 0.10.0
libtpu: 0.0.40
codegen_flags: <defaults>
</compile_context>

<pallas_src>
import jax
import jax.numpy as jnp
from jax.experimental import pallas as pl
from jax.experimental.pallas import tpu as pltpu


def _linear_leaky_kernel(slope_ref, x_ref, w_ref, b_ref, o_ref):
    # slope_ref: SMEM (1,)   f32 learnable negative slope
    # x_ref:  (tm, IN)   VMEM
    # w_ref:  (IN, OUT)  VMEM  (pre-transposed, resident across grid)
    # b_ref:  (1, OUT)   VMEM  (resident across grid)
    # o_ref:  (tm, OUT)  VMEM
    v1 = jnp.dot(x_ref[...], w_ref[...],
                 preferred_element_type=jnp.float32) + b_ref[...]
    slope = slope_ref[0]
    o_ref[...] = jnp.where(v1 > 0, v1, v1 * slope).astype(o_ref.dtype)


def prepare_params(weight, bias):
    """One-time (init-time) layout prep.

    weight: (OUT, IN) -> transposed to (IN, OUT) so the kernel runs the
    canonical (M,K)x(K,N) MXU contraction.  bias: (OUT,) -> (1, OUT).
    """
    w_t = jnp.asarray(weight).T              # (IN, OUT)
    b2 = jnp.asarray(bias).reshape(1, -1)    # (1, OUT)
    return w_t, b2


def _pick_tile(B):
    """Row-tile size: amortize per-step overhead, stay VMEM-safe on v7x,
    and keep >=2 grid steps (dual-TC sharding) whenever B allows."""
    if B <= 8:
        return B                              # single full-dim block (legal)
    half = (B // 2) // 8 * 8                  # multiple of 8, >=2 grid steps
    return min(1024, max(8, half))


def linear_leaky(x, w_t, b, negative_slope):
    """x: (B, IN); w_t: (IN, OUT); b: (1, OUT); negative_slope: (1,) f32.
    Returns (B, OUT) float32."""
    B, IN = x.shape
    OUT = w_t.shape[1]

    tm = _pick_tile(B)
    grid = (pl.cdiv(B, tm),)

    flops = 2 * B * IN * OUT
    bytes_accessed = 4 * (B * IN + IN * OUT + OUT + B * OUT)

    return pl.pallas_call(
        _linear_leaky_kernel,
        out_shape=jax.ShapeDtypeStruct((B, OUT), jnp.float32),
        grid=grid,
        in_specs=[
            pl.BlockSpec(memory_space=pltpu.SMEM),          # negative_slope
            pl.BlockSpec((tm, IN), lambda i: (i, 0)),        # x rows
            pl.BlockSpec((IN, OUT), lambda i: (0, 0)),       # weight (resident)
            pl.BlockSpec((1, OUT), lambda i: (0, 0)),        # bias (resident)
        ],
        out_specs=pl.BlockSpec((tm, OUT), lambda i: (i, 0)),
        compiler_params=pltpu.CompilerParams(
            dimension_semantics=("parallel",)),
        cost_estimate=pl.CostEstimate(
            flops=flops, transcendentals=0, bytes_accessed=bytes_accessed),
    )(negative_slope, x, w_t, b)


def reference(x, weight, bias, negative_slope):
    v1 = x @ weight.T + bias
    return jnp.where(v1 > 0, v1, v1 * negative_slope[0])


if __name__ == "__main__":
    key = jax.random.PRNGKey(0)
    k_x, k_w, k_b, k_x2 = jax.random.split(key, 4)

    IN, OUT = 10, 10
    # Deterministic init (matches nn.Linear uniform(-1/sqrt(IN), 1/sqrt(IN)))
    bound = 1.0 / jnp.sqrt(jnp.float32(IN))
    weight = jax.random.uniform(k_w, (OUT, IN), jnp.float32, -bound, bound)
    bias = jax.random.uniform(k_b, (OUT,), jnp.float32, -bound, bound)
    negative_slope = jnp.array([0.01], dtype=jnp.float32)

    # One-time parameter prep (transpose/reshape happens here, not per call).
    w_t, b2 = prepare_params(weight, bias)

    # Spec shape: x1 = torch.randn(1, 10)
    x1 = jax.random.normal(k_x, (1, IN), jnp.float32)
    out = jax.block_until_ready(linear_leaky(x1, w_t, b2, negative_slope))
    ref = reference(x1, weight, bias, negative_slope)
    assert out.shape == (1, OUT)
    assert jnp.allclose(out, ref, atol=1e-5, rtol=1e-5)

    # Secondary check exercising the multi-block (cdiv, partial last tile) path.
    xb = jax.random.normal(k_x2, (24, IN), jnp.float32)
    outb = jax.block_until_ready(linear_leaky(xb, w_t, b2, negative_slope))
    refb = reference(xb, weight, bias, negative_slope)
    assert outb.shape == (24, OUT)
    assert jnp.allclose(outb, refb, atol=1e-5, rtol=1e-5)

    print("KERNEL_OK")
</pallas_src>

<mosaic_0001>
module attributes {stable_mosaic.version = 11 : i64} {
  func.func @_linear_leaky_kernel(%arg0: i32, %arg1: memref<1xf32, #tpu.memory_space<smem>>, %arg2: memref<1x10xf32, #tpu.memory_space<vmem>>, %arg3: memref<10x10xf32, #tpu.memory_space<vmem>>, %arg4: memref<1x10xf32, #tpu.memory_space<vmem>>, %arg5: memref<1x10xf32, #tpu.memory_space<vmem>>) attributes {dimension_semantics = [#tpu.dimension_semantics<parallel>], iteration_bounds = array<i64: 1>, scalar_prefetch = 0 : i64, scratch_operands = 0 : i64, tpu.core_type = #tpu.core_type<tc>, window_params = [{transform_indices = @transform_0, window_bounds = array<i64: 1>}, {transform_indices = @transform_1, window_bounds = array<i64: 1, 10>}, {pipeline_mode = #tpu.pipeline_mode<synchronous>, transform_indices = @transform_2, window_bounds = array<i64: 10, 10>}, {pipeline_mode = #tpu.pipeline_mode<synchronous>, transform_indices = @transform_3, window_bounds = array<i64: 1, 10>}, {transform_indices = @transform_4, window_bounds = array<i64: 1, 10>}]} {
    %c0 = arith.constant 0 : index
    %c0_0 = arith.constant 0 : index
    %0 = vector.load %arg2[%c0, %c0_0] : memref<1x10xf32, #tpu.memory_space<vmem>>, vector<1x10xf32>
    %c0_1 = arith.constant 0 : index
    %c0_2 = arith.constant 0 : index
    %1 = vector.load %arg3[%c0_1, %c0_2] : memref<10x10xf32, #tpu.memory_space<vmem>>, vector<10x10xf32>
    %cst = arith.constant dense<0.000000e+00> : vector<1x10xf32>
    %2 = tpu.matmul %0, %1, %cst {dimension_numbers = #tpu.dot_dimension_numbers<[1], [0], [0], [1], [0, 0, 1, 1], [], []>} : vector<1x10xf32>, vector<10x10xf32>, vector<1x10xf32> -> vector<1x10xf32>
    %c0_3 = arith.constant 0 : index
    %c0_4 = arith.constant 0 : index
    %3 = vector.load %arg4[%c0_3, %c0_4] : memref<1x10xf32, #tpu.memory_space<vmem>>, vector<1x10xf32>
    %4 = arith.addf %2, %3 : vector<1x10xf32>
    %c0_5 = arith.constant 0 : index
    %5 = memref.load %arg1[%c0_5] : memref<1xf32, #tpu.memory_space<smem>>
    %cst_6 = arith.constant 0.000000e+00 : f32
    %6 = vector.broadcast %cst_6 : f32 to vector<1x10xf32>
    %7 = arith.cmpf ogt, %4, %6 : vector<1x10xf32>
    %8 = vector.broadcast %5 : f32 to vector<1x10xf32>
    %9 = arith.mulf %4, %8 : vector<1x10xf32>
    %10 = arith.select %7, %4, %9 : vector<1x10xi1>, vector<1x10xf32>
    %c0_7 = arith.constant 0 : index
    %c0_8 = arith.constant 0 : index
    %11 = vector.load %arg5[%c0_7, %c0_8] : memref<1x10xf32, #tpu.memory_space<vmem>>, vector<1x10xf32>
    tpu.vector_store %arg5[%c0_7, %c0_8], %10 {strides = array<i32>} : memref<1x10xf32, #tpu.memory_space<vmem>>, vector<1x10xf32>,
    return
  }
  func.func @transform_0(%arg0: i32) -> i32 {
    %c0_i32 = arith.constant 0 : i32
    %c0_i32_0 = arith.constant 0 : i32
    return %c0_i32 : i32
  }
  func.func @transform_1(%arg0: i32) -> (i32, i32) {
    %c0_i32 = arith.constant 0 : i32
    %c0_i32_0 = arith.constant 0 : i32
    return %arg0, %c0_i32 : i32, i32
  }
  func.func @transform_2(%arg0: i32) -> (i32, i32) {
    %c0_i32 = arith.constant 0 : i32
    %c0_i32_0 = arith.constant 0 : i32
    %c0_i32_1 = arith.constant 0 : i32
    return %c0_i32, %c0_i32_0 : i32, i32
  }
  func.func @transform_3(%arg0: i32) -> (i32, i32) {
    %c0_i32 = arith.constant 0 : i32
    %c0_i32_0 = arith.constant 0 : i32
    %c0_i32_1 = arith.constant 0 : i32
    return %c0_i32, %c0_i32_0 : i32, i32
  }
  func.func @transform_4(%arg0: i32) -> (i32, i32) {
    %c0_i32 = arith.constant 0 : i32
    %c0_i32_0 = arith.constant 0 : i32
    return %arg0, %c0_i32 : i32, i32
  }
}

</mosaic_0001>

<llo_original>
// kernel: tpu_custom_call.1
$region0: #{tpu_custom_call.1}
  #allocation0 [shape = 'u32[]', space=smem, size = 0x4, offset = 0x4, fixed_abs, tag = 'smem constant byte address 0x4 - core index']
  #allocation1 [shape = 'u32[72,128]{1,0:T(1,128)}', space=vmem, size = 0x9000, scoped, tag = 'internal scratch']
  #allocation2 [shape = 'f32[1]{0:T(128)S(6)}', space=smem, size = 0x200, scoped, tag = 'scoped memory for tpu_custom_call.1']
  %s0 = inlined_call_operand.<no memory space> [shape: f32[1], index: 0, kind: input, shape index: {}]
  %s1 = inlined_call_operand.vmem [shape: f32[1,10], index: 1, kind: input, shape index: {}]
  %s2 = inlined_call_operand.hbm [shape: f32[10,10], index: 2, kind: input, shape index: {}]
  %s3 = inlined_call_operand.vmem [shape: f32[1,10], index: 3, kind: input, shape index: {}]
  %s4 = inlined_call_operand.hbm [shape: f32[1,10], index: 4, kind: output, shape index: {}]
  %s5 = sld [smem:[#allocation0]]
  $region30: #{tpu_custom_call.1} parent=0
    _
  %s7 = ssub.s32 1, %s5
  %s8 = scalar_select 0, %s7, %s5
  %9 = sst [smem:[#allocation2]] %s0
  $region1: #{tpu_custom_call.1} parent=0
    #allocation3 [shape = 'u8[8192]{0}', space=vmem, size = 0x2000, scoped, tag = 'input window, operand 2, single buffered']
    #allocation4 [shape = 's32[1]{0}', space=sflag, size = 0x4, scoped, tag = 'scoped memory for tpu_custom_call.1']
    #allocation5 [shape = 's32[1]{0}', space=sflag, size = 0x4, scoped, tag = 'scoped memory for tpu_custom_call.1']
    #allocation6 [shape = 'u8[512]{0}', space=vmem, size = 0x400, scoped, tag = 'output window, operand 0, single buffered']
    %10 = vsyncpa [#allocation4], 0
    %11 = vsyncpa [#allocation5], 0
    // Predicated region
    $region2: #{tpu_custom_call.1} parent=1 // pred_check
      _
    $region3: #{tpu_custom_call.1} parent=1 // pred_check_branch
      %13 = sbr.rel (0) target = $region5
    $region4: #{tpu_custom_call.1} parent=1 // pred_region
      _
    $region5: #{tpu_custom_call.1} parent=1 // pred_fallthru
      _
    // Predicated region
    $region6: #{tpu_custom_call.1} parent=1 // pred_check
      _
    $region7: #{tpu_custom_call.1} parent=1 // pred_check_branch
      %15 = sbr.rel (0) target = $region9
    $region8: #{tpu_custom_call.1} parent=1 // pred_region
      _
    $region9: #{tpu_custom_call.1} parent=1 // pred_fallthru
      _
    // Predicated region
    $region10: #{tpu_custom_call.1} parent=1 // pred_check
      _
    $region11: #{tpu_custom_call.1} parent=1 // pred_check_branch
      %17 = sbr.rel (0) target = $region13
    $region12: #{tpu_custom_call.1} parent=1 // pred_region
      %19 = vsyncadd [#allocation4], 0
      %s20 = sshll.u32 %s2, 4
      %s21 = int_to_ptr.hbm [resolvable:$true] %s20
      %s22 = sshll.u32 [#allocation3], 4
      %s23 = int_to_ptr.vmem [resolvable:$true] %s22
      %28 = dma.hbm_to_vmem [thread:$0]  %s21, 256, %s23, [#allocation4], 128, 128, 8
    $region13: #{tpu_custom_call.1} parent=1 // pred_fallthru
      _
    // Predicated region
    $region14: #{tpu_custom_call.1} parent=1 // pred_check
      _
    $region15: #{tpu_custom_call.1} parent=1 // pred_check_branch
      %30 = sbr.rel (0) target = $region17
    $region16: #{tpu_custom_call.1} parent=1 // pred_region
      _
    $region17: #{tpu_custom_call.1} parent=1 // pred_fallthru
      _
    // Predicated region
    $region18: #{tpu_custom_call.1} parent=1 // pred_check
      _
    $region19: #{tpu_custom_call.1} parent=1 // pred_check_branch
      %32 = sbr.rel (0) target = $region21
    $region20: #{tpu_custom_call.1} parent=1 // pred_region
      %34 = dma.done [#allocation4], 256
    $region21: #{tpu_custom_call.1} parent=1 // pred_fallthru
      _
    %v35 = vld [vmem:[%s1] sm:$0x1]
    %v36 = vld [vmem:[#allocation3] sm:$0xff]
    %v37 = vld [vmem:[#allocation3 + $0x8] sm:$0x3]
    %v38 = vld [vmem:[%s3] sm:$0x1]
    %vm39 = vcmask 80896
    %v41 = vsel %vm39, %v35, 0
    %vm43 = vcmask 1041408
    %v45 = vsel %vm43, %v37, 0
    %47 = vmatpush.msra.mxu0 0.0
    %48 = vmatpush.msra.mxu0 0.0
    %49 = vmatpush.msra.mxu0 0.0
    %50 = vmatpush.msra.mxu0 0.0
    %51 = vmatpush.msra.mxu0 0.0
    %52 = vmatpush.msra.mxu0 0.0
    %53 = vmatpush.msra.mxu0 0.0
    %54 = vmatpush.msra.mxu0 0.0
    %55 = vmatpush.msra.mxu0 0.0
    %56 = vmatpush.msra.mxu0 0.0
    %57 = vmatpush.msra.mxu0 0.0
    %58 = vmatpush.msra.mxu0 0.0
    %59 = vmatpush.msra.mxu0 0.0
    %60 = vmatpush.msra.mxu0 0.0
    %61 = vmatpush.msra.mxu0 %v45
    %62 = vmatpush.msra.mxu0 %v36
    %63 = vmatmul.f32.gmra.mxu0 %v41
    %v64 = vpop.f32.mrf.mxu0
    %v65 = vadd.f32 %v38, %v64
    %66 = vdwg.mxu0
    %s67 = sld [smem:[#allocation2]]
    %vm68 = vcmp.gt.f32.partialorder %v65, 0.0
    %v69 = vstv %s67
    %v70 = vmul.f32 %v65, %v69
    %v71 = vsel %vm68, %v65, %v70
    %vm72 = vcmask 73728
    %73 = vst.msk [vmem:[#allocation6] sm:$0x1] %vm72, %v71
    // Predicated region
    $region22: #{tpu_custom_call.1} parent=1 // pred_check
      _
    $region23: #{tpu_custom_call.1} parent=1 // pred_check_branch
      %75 = sbr.rel (0) target = $region25
    $region24: #{tpu_custom_call.1} parent=1 // pred_region
      %77 = vsyncadd [#allocation5], 0
      %s79 = sshll.u32 [#allocation6], 4
      %s80 = int_to_ptr.vmem [resolvable:$true] %s79
      %s81 = sshll.u32 %s4, 4
      %s82 = int_to_ptr.hbm [resolvable:$true] %s81
      %84 = dma.vmem_to_hbm [thread:$0]  %s80, 16, %s82, [#allocation5]
    $region25: #{tpu_custom_call.1} parent=1 // pred_fallthru
      _
    // Predicated region
    $region26: #{tpu_custom_call.1} parent=1 // pred_check
      _
    $region27: #{tpu_custom_call.1} parent=1 // pred_check_branch
      %86 = sbr.rel (0) target = $region29
    $region28: #{tpu_custom_call.1} parent=1 // pred_region
      %88 = dma.done [#allocation5], 16
    $region29: #{tpu_custom_call.1} parent=1 // pred_fallthru
      _
    %89 = vsyncpa [#allocation4], 1
    %90 = vsyncpa [#allocation5], 1

</llo_original>
